<compile_context>
chip_gen: v5e
topology: v5e:2x2
jax: 0.10.0
libtpu: 0.0.40
codegen_flags: <defaults>
</compile_context>

<pallas_src>
import jax
import jax.numpy as jnp
from jax.experimental import pallas as pl
from jax.experimental.pallas import tpu as pltpu


# ---------------------------------------------------------------------------
# Tiling helpers
# ---------------------------------------------------------------------------
def _round_up(v, m):
    return ((v + m - 1) // m) * m


def _vmem_capacity_bytes():
    """Physical VMEM per core (128 MiB v5e/v6e, 64 MiB v7x); safe fallback."""
    try:
        cap = int(pltpu.get_tpu_info().vmem_capacity_bytes)
        if cap > 0:
            return cap
    except Exception:
        pass
    return 64 * 1024 * 1024  # conservative (v7x-sized) default


def _pick_tn(h, budget_cols, rows_per_block, itemsize, min_steps=4):
    """Lane-tile width: multiple of 128 (or full H when H <= 128), sized so one
    input block is ~4 MiB (roofline-sized DMA), capped by the VMEM column
    budget, and small enough to keep >= min_steps grid steps when H allows it
    (pipelining everywhere, 2 TensorCores on v7x)."""
    if h <= 128:
        return h  # full-extent lane block
    target_cols = max(128, (4 << 20) // max(1, rows_per_block * itemsize))
    tn = min(int(budget_cols), target_cols, _round_up(h, 128))
    tn = max(128, (tn // 128) * 128)
    if h > 128 * min_steps:
        tn = min(tn, max(128, ((h // min_steps) // 128) * 128))
    return tn


# ---------------------------------------------------------------------------
# Kernels
# ---------------------------------------------------------------------------
def _softmax_single_pass_kernel(x_ref, o_ref):
    # Block: (S, tn) -- full reduction axis, one lane tile.
    x = x_ref[...].astype(jnp.float32)
    x_max = jnp.max(x, axis=0, keepdims=True)          # (1, tn)
    x_exp = jnp.exp(x - x_max)                          # (S, tn)
    denom = jnp.sum(x_exp, axis=0, keepdims=True)       # (1, tn)
    o_ref[...] = (x_exp / denom).astype(o_ref.dtype)    # exact division


def _softmax_stats_kernel(s_ref, x_ref, lse_ref, m_sc, l_sc):
    # Online (running) max / sum-of-exp over the S grid axis (grid axis 1).
    # s_ref: scalar-prefetched valid row count (masks the ragged S tail).
    si = pl.program_id(1)
    ts = x_ref.shape[0]

    @pl.when(si == 0)
    def _():
        m_sc[...] = jnp.full_like(m_sc, -jnp.inf)
        l_sc[...] = jnp.zeros_like(l_sc)

    x = x_ref[...].astype(jnp.float32)                   # (ts, tn)
    row = jax.lax.broadcasted_iota(jnp.int32, x.shape, 0) + si * ts
    x = jnp.where(row < s_ref[0], x, -jnp.inf)           # mask OOB tail rows

    m_new = jnp.maximum(m_sc[...], jnp.max(x, axis=0, keepdims=True))
    l_sc[...] = l_sc[...] * jnp.exp(m_sc[...] - m_new) + jnp.sum(
        jnp.exp(x - m_new), axis=0, keepdims=True)
    m_sc[...] = m_new

    @pl.when(si == pl.num_programs(1) - 1)
    def _():
        lse_ref[...] = m_sc[...] + jnp.log(l_sc[...])    # single side array


def _softmax_normalize_kernel(x_ref, lse_ref, o_ref):
    x = x_ref[...].astype(jnp.float32)
    o_ref[...] = jnp.exp(x - lse_ref[...]).astype(o_ref.dtype)


# ---------------------------------------------------------------------------
# Wrapper
# ---------------------------------------------------------------------------
def softmax_stable(x, force_two_pass=False):
    """Stable softmax over axis 0 of a (S, H) (or (S,)) floating-point array."""
    orig_ndim = x.ndim
    if x.ndim == 1:
        x = x[:, None]
    assert x.ndim == 2, "kernel expects (S, H) or (S,)"
    S, H = x.shape
    itemsize = jnp.dtype(x.dtype).itemsize

    cap = _vmem_capacity_bytes()
    vmem_limit = min(int(cap * 0.90), 128 * 1024 * 1024)
    tile_budget = int(vmem_limit * 0.85)   # headroom for compiler scratch

    # Single-pass per lane-column bytes: double-buffered input + output tiles
    # plus the f32 cast and f32 exp intermediates (both live).
    per_col = S * (2 * itemsize + 2 * itemsize + 8)
    min_tn = H if H <= 128 else 128
    use_single = (not force_two_pass) and (per_col * min_tn <= tile_budget)

    if use_single:
        tn = _pick_tn(H, tile_budget // per_col, S, itemsize)
        out = pl.pallas_call(
            _softmax_single_pass_kernel,
            out_shape=jax.ShapeDtypeStruct((S, H), x.dtype),
            grid_spec=pltpu.PrefetchScalarGridSpec(
                num_scalar_prefetch=0,
                grid=(pl.cdiv(H, tn),),
                in_specs=[pl.BlockSpec((S, tn), lambda j: (0, j))],
                out_specs=pl.BlockSpec((S, tn), lambda j: (0, j)),
            ),
            compiler_params=pltpu.CompilerParams(
                dimension_semantics=("parallel",),
                vmem_limit_bytes=vmem_limit,
            ),
        )(x)
    else:
        # Online two-pass path: constant working set regardless of S.
        ts = min(1024, _round_up(S, 8))
        per_col_tp = ts * (2 * itemsize + 2 * itemsize + 8)
        tn = _pick_tn(H, max(128, tile_budget // per_col_tp), ts, itemsize)
        grid = (pl.cdiv(H, tn), pl.cdiv(S, ts))  # reduction (S) axis last
        s_valid = jnp.array([S], dtype=jnp.int32)

        lse = pl.pallas_call(
            _softmax_stats_kernel,
            out_shape=jax.ShapeDtypeStruct((1, H), jnp.float32),
            grid_spec=pltpu.PrefetchScalarGridSpec(
                num_scalar_prefetch=1,
                grid=grid,
                in_specs=[pl.BlockSpec((ts, tn), lambda j, i, s: (i, j))],
                out_specs=pl.BlockSpec((1, tn), lambda j, i, s: (0, j)),
                scratch_shapes=[pltpu.VMEM((1, tn), jnp.float32),
                                pltpu.VMEM((1, tn), jnp.float32)],
            ),
            compiler_params=pltpu.CompilerParams(
                dimension_semantics=("parallel", "arbitrary"),
                vmem_limit_bytes=vmem_limit,
            ),
        )(s_valid, x)

        out = pl.pallas_call(
            _softmax_normalize_kernel,
            out_shape=jax.ShapeDtypeStruct((S, H), x.dtype),
            grid_spec=pltpu.PrefetchScalarGridSpec(
                num_scalar_prefetch=0,
                grid=grid,
                in_specs=[pl.BlockSpec((ts, tn), lambda j, i: (i, j)),
                          pl.BlockSpec((1, tn), lambda j, i: (0, j))],
                out_specs=pl.BlockSpec((ts, tn), lambda j, i: (i, j)),
            ),
            compiler_params=pltpu.CompilerParams(
                dimension_semantics=("parallel", "parallel"),
                vmem_limit_bytes=vmem_limit,
            ),
        )(x, lse)

    if orig_ndim == 1:
        out = out[:, 0]
    return out


def softmax_stable_ref(x):
    x = x.astype(jnp.float32)
    x_max = jnp.max(x, axis=0, keepdims=True)
    x_exp = jnp.exp(x - x_max)
    return x_exp / jnp.sum(x_exp, axis=0, keepdims=True)


if __name__ == "__main__":
    key = jax.random.PRNGKey(0)
    k1, k2, k3 = jax.random.split(key, 3)

    # Small shape implied by the module: softmax over dim 0 of (seq=8, hidden=32).
    x = jax.random.normal(k1, (8, 32), dtype=jnp.float32) * 3.0
    out = jax.block_until_ready(softmax_stable(x))
    ref = softmax_stable_ref(x)
    assert out.shape == x.shape and out.dtype == x.dtype
    assert jnp.allclose(out, ref, atol=1e-5, rtol=1e-5), "single-pass mismatch"
    assert jnp.allclose(jnp.sum(out, axis=0), jnp.ones((32,)), atol=1e-5)

    # Ragged lane axis (H not a multiple of 128) on the single-pass path:
    # exercises the cdiv lane grid / boundary-block handling (no host pad).
    x3 = jax.random.normal(k3, (64, 200), dtype=jnp.float32) * 2.0
    out3 = jax.block_until_ready(softmax_stable(x3))
    assert jnp.allclose(out3, softmax_stable_ref(x3), atol=1e-5, rtol=1e-5), \
        "ragged-H single-pass mismatch"

    # Online two-pass path (used automatically when the full reduction axis
    # exceeds the VMEM budget), exercised here on a small ragged shape to hit
    # the in-kernel S-tail masking and the lse finalize.
    x2 = jax.random.normal(k2, (300, 200), dtype=jnp.float32) * 2.0
    out2 = jax.block_until_ready(softmax_stable(x2, force_two_pass=True))
    ref2 = softmax_stable_ref(x2)
    assert out2.shape == x2.shape and out2.dtype == x2.dtype
    assert jnp.allclose(out2, ref2, atol=1e-5, rtol=1e-4), "two-pass mismatch"

    print("KERNEL_OK")
</pallas_src>

<mosaic_0001>
module attributes {stable_mosaic.version = 11 : i64} {
  func.func @_softmax_single_pass_kernel(%arg0: i32, %arg1: memref<8x32xf32, #tpu.memory_space<vmem>>, %arg2: memref<8x32xf32, #tpu.memory_space<vmem>>) attributes {dimension_semantics = [#tpu.dimension_semantics<parallel>], iteration_bounds = array<i64: 1>, scalar_prefetch = 0 : i64, scratch_operands = 0 : i64, tpu.core_type = #tpu.core_type<tc>, window_params = [{transform_indices = @transform_0, window_bounds = array<i64: 8, 32>}, {transform_indices = @transform_1, window_bounds = array<i64: 8, 32>}]} {
    %c0 = arith.constant 0 : index
    %c0_0 = arith.constant 0 : index
    %0 = vector.load %arg1[%c0, %c0_0] : memref<8x32xf32, #tpu.memory_space<vmem>>, vector<8x32xf32>
    %cst = arith.constant dense<0xFF800000> : vector<32xf32>
    %1 = vector.multi_reduction <maximumf>, %0, %cst [0] : vector<8x32xf32> to vector<32xf32>
    %2 = vector.shape_cast %1 : vector<32xf32> to vector<1x32xf32>
    %3 = vector.broadcast %2 : vector<1x32xf32> to vector<8x32xf32>
    %4 = arith.subf %0, %3 : vector<8x32xf32>
    %5 = math.exp %4 : vector<8x32xf32>
    %cst_1 = arith.constant dense<0.000000e+00> : vector<32xf32>
    %6 = vector.multi_reduction <add>, %5, %cst_1 [0] : vector<8x32xf32> to vector<32xf32>
    %7 = vector.shape_cast %6 : vector<32xf32> to vector<1x32xf32>
    %8 = vector.broadcast %7 : vector<1x32xf32> to vector<8x32xf32>
    %9 = arith.divf %5, %8 : vector<8x32xf32>
    %c0_2 = arith.constant 0 : index
    %c0_3 = arith.constant 0 : index
    %10 = vector.load %arg2[%c0_2, %c0_3] : memref<8x32xf32, #tpu.memory_space<vmem>>, vector<8x32xf32>
    tpu.vector_store %arg2[%c0_2, %c0_3], %9 {strides = array<i32>} : memref<8x32xf32, #tpu.memory_space<vmem>>, vector<8x32xf32>,
    return
  }
  func.func @transform_0(%arg0: i32) -> (i32, i32) {
    %c0_i32 = arith.constant 0 : i32
    %c0_i32_0 = arith.constant 0 : i32
    return %c0_i32, %arg0 : i32, i32
  }
  func.func @transform_1(%arg0: i32) -> (i32, i32) {
    %c0_i32 = arith.constant 0 : i32
    %c0_i32_0 = arith.constant 0 : i32
    return %c0_i32, %arg0 : i32, i32
  }
}

</mosaic_0001>

<llo_original>
// kernel: tpu_custom_call.1
$region0: #{tpu_custom_call.1}
  #allocation0 [shape = 'u32[]', space=smem, size = 0x4, offset = 0x4, fixed_abs, tag = 'smem constant byte address 0x4 - core index']
  #allocation1 [shape = 'u32[72,128]{1,0:T(1,128)}', space=vmem, size = 0x9000, scoped, tag = 'internal scratch']
  %s0 = inlined_call_operand.hbm [shape: f32[8,32], index: 0, kind: input, shape index: {}]
  %s1 = inlined_call_operand.hbm [shape: f32[8,32], index: 1, kind: output, shape index: {}]
  %s2 = sld [smem:[#allocation0]]
  $region18: #{tpu_custom_call.1} parent=0
    _
  %s4 = ssub.s32 1, %s2
  %s5 = scalar_select 0, %s4, %s2
  $region1: #{tpu_custom_call.1} parent=0
    #allocation2 [shape = 'u8[4096]{0}', space=vmem, size = 0x1000, scoped, tag = 'input window, operand 0, single buffered']
    #allocation3 [shape = 's32[1]{0}', space=sflag, size = 0x4, scoped, tag = 'scoped memory for tpu_custom_call.1']
    #allocation4 [shape = 's32[1]{0}', space=sflag, size = 0x4, scoped, tag = 'scoped memory for tpu_custom_call.1']
    #allocation5 [shape = 'u8[4096]{0}', space=vmem, size = 0x1000, scoped, tag = 'output window, operand 0, single buffered']
    %6 = vsyncpa [#allocation3], 0
    %7 = vsyncpa [#allocation4], 0
    // Predicated region
    $region2: #{tpu_custom_call.1} parent=1 // pred_check
      _
    $region3: #{tpu_custom_call.1} parent=1 // pred_check_branch
      %9 = sbr.rel (0) target = $region5
    $region4: #{tpu_custom_call.1} parent=1 // pred_region
      %11 = vsyncadd [#allocation3], 0
      %s13 = sshll.u32 %s0, 4
      %s14 = int_to_ptr.hbm [resolvable:$true] %s13
      %s15 = sshll.u32 [#allocation2], 4
      %s16 = int_to_ptr.vmem [resolvable:$true] %s15
      %18 = dma.hbm_to_vmem [thread:$0]  %s14, 128, %s16, [#allocation3]
    $region5: #{tpu_custom_call.1} parent=1 // pred_fallthru
      _
    // Predicated region
    $region6: #{tpu_custom_call.1} parent=1 // pred_check
      _
    $region7: #{tpu_custom_call.1} parent=1 // pred_check_branch
      %20 = sbr.rel (0) target = $region9
    $region8: #{tpu_custom_call.1} parent=1 // pred_region
      %22 = dma.done [#allocation3], 128
    $region9: #{tpu_custom_call.1} parent=1 // pred_fallthru
      _
    %v23 = vld [vmem:[#allocation2] sm:$0xff]
    %vm24 = vcmask 261120
    %v25 = vsel %vm24, %v23, -inf
    %v26 = vrot.slane %v25, 4
    %v27 = vmax.f32 %v25, %v26
    %v28 = vrot.slane %v27, 2
    %v29 = vmax.f32 %v27, %v28
    %v30 = vrot.slane %v29, 1
    %v31 = vmax.f32 %v29, %v30
    %v32 = vsub.f32 %v23, %v31
    %v33 = vmul.f32 %v32, 1.442695
    %v34 = vpow.pop %v33
    %v35 = vsel %vm24, %v34, 0.0
    %v36 = vrot.slane %v35, 4
    %v37 = vadd.f32 %v35, %v36
    %v38 = vrot.slane %v37, 2
    %v39 = vadd.f32 %v37, %v38
    %v40 = vrot.slane %v39, 1
    %v41 = vadd.f32 %v39, %v40
    %v42 = vrcp.pop %v41
    %v43 = vmul.f32 %v41, %v42
    %v44 = vsub.f32 1.0, %v43
    %v45 = vmul.f32 %v42, %v44
    %v46 = vadd.f32 %v42, %v45
    %vm47 = vweird.f32 %v41
    %vm48 = vweird.f32 %v42
    %vm49 = vmor %vm47, %vm48
    %v50 = vsel %vm49, %v42, %v46
    %v51 = vand.u32 2147483647, %v41
    %vm52 = vcmp.eq.f32.partialorder %v51, 8.507059e+37
    %v53 = vand.u32 %v41, 2147483648
    %v54 = vor.u32 1.1754944e-38, %v53
    %v55 = vsel %vm52, %v54, %v50
    %v56 = vmul.f32 %v34, %v55
    %57 = vst.msk [vmem:[#allocation5] sm:$0xff] %vm24, %v56
    // Predicated region
    $region10: #{tpu_custom_call.1} parent=1 // pred_check
      _
    $region11: #{tpu_custom_call.1} parent=1 // pred_check_branch
      %59 = sbr.rel (0) target = $region13
    $region12: #{tpu_custom_call.1} parent=1 // pred_region
      %61 = vsyncadd [#allocation4], 0
      %s63 = sshll.u32 [#allocation5], 4
      %s64 = int_to_ptr.vmem [resolvable:$true] %s63
      %s65 = sshll.u32 %s1, 4
      %s66 = int_to_ptr.hbm [resolvable:$true] %s65
      %68 = dma.vmem_to_hbm [thread:$0]  %s64, 128, %s66, [#allocation4]
    $region13: #{tpu_custom_call.1} parent=1 // pred_fallthru
      _
    // Predicated region
    $region14: #{tpu_custom_call.1} parent=1 // pred_check
      _
    $region15: #{tpu_custom_call.1} parent=1 // pred_check_branch
      %70 = sbr.rel (0) target = $region17
    $region16: #{tpu_custom_call.1} parent=1 // pred_region
      %72 = dma.done [#allocation4], 128
    $region17: #{tpu_custom_call.1} parent=1 // pred_fallthru
      _
    %73 = vsyncpa [#allocation3], 1
    %74 = vsyncpa [#allocation4], 1

</llo_original>
